<compile_context>
chip_gen: v7x
topology: tpu7x:2x2x1
jax: 0.10.0
libtpu: 0.0.40
codegen_flags: <defaults>
</compile_context>

<pallas_src>
import functools

import jax
import jax.numpy as jnp
from jax.experimental import pallas as pl
from jax.experimental.pallas import tpu as pltpu

EPS = 1e-5      # PyTorch GroupNorm default
LANES = 128     # TPU lane width; one flat output tile is (R, LANES)


def _upsample_kernel(rv_ref, m_ref, gamma_ref, beta_ref, o_ref):
    # rv_ref:    (1, R, RIN)          VMEM  pre-gathered input rows of one sample
    # m_ref:     (RIN, Cout*LANES)    VMEM  folded conv-transpose matrix (all channels)
    # gamma_ref: (Cout,)              SMEM  GroupNorm scale
    # beta_ref:  (Cout,)              SMEM  GroupNorm shift
    # o_ref:     (1, Cout, R, LANES)  VMEM  this sample's output, NCHW-flat per channel
    cout = o_ref.shape[1]
    r = o_ref.shape[2]

    # Entire transposed conv (all taps, stride-2 interleave, ALL output channels)
    # as one (R, RIN) @ (RIN, Cout*128) MXU matmul.
    y = jnp.dot(rv_ref[0], m_ref[...], preferred_element_type=jnp.float32)  # (R, Cout*128)

    inv_cnt = 1.0 / (r * LANES)
    for co in range(cout):                          # static unroll over Cout lane-slices
        yc = y[:, co * LANES:(co + 1) * LANES]      # (R, 128), 128-lane-aligned slice
        # single-pass GroupNorm stats (num_groups == num_channels -> per (n, co))
        s1 = jnp.sum(yc)
        s2 = jnp.sum(yc * yc)
        mean = s1 * inv_cnt
        var = s2 * inv_cnt - mean * mean
        yn = (yc - mean) * jax.lax.rsqrt(var + EPS)
        yn = yn * gamma_ref[co] + beta_ref[co]
        # TODO(synk): dropout path (apply_dropout=True) not implemented; would use
        # pltpu.prng_seed + pltpu.stateful_bernoulli here.
        o_ref[0, co] = jnp.maximum(yn, 0.0)         # ReLU; unmasked (R, 128) store


def _build_phase_matrix(w_ct, W):
    """Fold ConvTranspose2d(k=4, s=2, p=1) taps + stride-2 output interleave into one
    dense matrix M of shape ((ST+2)*Cin*W, Cout*QT*Wout) so that for flat-row tile r:
        out_flat[r, co*128 + q*Wout + ow] = RV[r, :] @ M[:, co*128 + q*Wout + ow]
    where RV row-columns are ordered (s, ci, iw) and RV[r, (s*Cin+ci)*W + iw]
    equals x_padded[ci, ST*r + s, iw] (padded rows are ih = -1 and ih = H)."""
    Cin, Cout, K, _ = w_ct.shape
    Wout = 2 * W
    QT = LANES // Wout          # output rows per 128-lane tile
    ST = QT // 2                # input-row stride of the gather
    w_ct = w_ct.astype(jnp.float32)

    q = jnp.arange(QT)          # output row within a tile
    ow = jnp.arange(Wout)       # output column
    s_idx = jnp.arange(ST + 2)  # row-shift group in RV
    iw = jnp.arange(W)          # input column

    m6 = jnp.zeros((ST + 2, Cin, W, Cout, QT, Wout), jnp.float32)
    for a in (0, 1):            # the two kernel rows feeding each output-row phase
        for b in (0, 1):        # the two kernel cols feeding each output-col phase
            smask = (s_idx[:, None] == ((q[None, :] + 1) // 2 + a)).astype(jnp.float32)
            wmask = (iw[:, None] ==
                     (ow[None, :] // 2 + ow[None, :] % 2 + b - 1)).astype(jnp.float32)
            kh = (K - 1) - 2 * a - (q % 2)               # (QT,)
            kw = (K - 1) - 2 * b - (ow % 2)              # (Wout,)
            wsel = w_ct[:, :, kh[:, None], kw[None, :]]  # (Cin, Cout, QT, Wout)
            m6 = m6 + (smask[:, None, None, None, :, None]
                       * wmask[None, None, :, None, None, :]
                       * wsel[None, :, None, :, :, :])
    # axes already ordered rows=(s, ci, iw), cols=(co, q, ow): fold directly
    return m6.reshape((ST + 2) * Cin * W, Cout * QT * Wout)


@functools.partial(jax.jit, static_argnames=("stride", "padding"))
def upsample_forward(x_nchw, w_ct, gamma, beta, *, stride=2, padding=1):
    """x_nchw: (N, Cin, H, W); w_ct: (Cin, Cout, K, K) (PyTorch ConvTranspose2d layout)."""
    N, Cin, H, W = x_nchw.shape
    Cin_w, Cout, K, _ = w_ct.shape
    assert Cin == Cin_w
    assert stride == 2 and padding == 1 and K == 4, (
        "kernel is specialized to the module's ConvTranspose2d(kernel=4, stride=2, pad=1)")
    Hout, Wout = 2 * H, 2 * W
    assert LANES % Wout == 0 and (LANES // Wout) % 2 == 0, "2*W must divide 128 evenly"
    QT = LANES // Wout
    ST = QT // 2
    assert Hout % QT == 0
    R = (Hout * Wout) // LANES
    RIN = (ST + 2) * Cin * W

    x = x_nchw.astype(jnp.float32)

    # ---- pre-gather the strided input rows each 128-pixel output tile needs ----------
    # Done in the wrapper with static XLA slices (no strided ref indexing in-kernel):
    # RV[n, r, (s*Cin+ci)*W + iw] = x_pad[n, ci, ST*r + s, iw], pad rows = ih=-1 / ih=H.
    x_pad = jnp.pad(x, ((0, 0), (0, 0), (1, 1), (0, 0)))            # (N, Cin, H+2, W)
    pieces = [x_pad[:, :, s: s + ST * R: ST, :] for s in range(ST + 2)]  # (N, Cin, R, W)
    rv = jnp.stack(pieces, axis=1)                                  # (N, ST+2, Cin, R, W)
    rv = jnp.transpose(rv, (0, 3, 1, 2, 4)).reshape(N, R, RIN)      # lane-dense (last=256)

    m = _build_phase_matrix(w_ct, W)                                # (RIN, Cout*128)
    gamma_s = gamma.astype(jnp.float32).reshape(Cout)
    beta_s = beta.astype(jnp.float32).reshape(Cout)

    out_flat = pl.pallas_call(
        _upsample_kernel,
        out_shape=jax.ShapeDtypeStruct((N, Cout, R, LANES), jnp.float32),
        grid_spec=pltpu.PrefetchScalarGridSpec(
            num_scalar_prefetch=0,
            grid=(N,),                                              # one step per sample
            in_specs=[
                pl.BlockSpec((1, R, RIN), lambda n: (n, 0, 0)),
                pl.BlockSpec((RIN, Cout * LANES), lambda n: (0, 0)),  # constant: DMA once
                pl.BlockSpec(memory_space=pltpu.MemorySpace.SMEM),
                pl.BlockSpec(memory_space=pltpu.MemorySpace.SMEM),
            ],
            out_specs=pl.BlockSpec((1, Cout, R, LANES), lambda n: (n, 0, 0, 0)),
        ),
        compiler_params=pltpu.CompilerParams(
            dimension_semantics=("parallel",)),
    )(rv, m, gamma_s, beta_s)

    # metadata-only reshape back to NCHW (no transpose / relayout)
    return out_flat.reshape(N, Cout, Hout, Wout)


def reference_forward(x_nchw, w_ct, gamma, beta, *, stride=2, padding=1):
    """Pure-XLA reference of the same PyTorch semantics (for verification)."""
    K = w_ct.shape[-1]
    w_conv = jnp.transpose(jnp.flip(w_ct, axis=(2, 3)), (1, 0, 2, 3))   # OIHW
    y = jax.lax.conv_general_dilated(
        x_nchw.astype(jnp.float32), w_conv.astype(jnp.float32),
        window_strides=(1, 1),
        padding=[(K - 1 - padding, K - 1 - padding)] * 2,
        lhs_dilation=(stride, stride),
        dimension_numbers=("NCHW", "OIHW", "NCHW"))
    mean = y.mean(axis=(2, 3), keepdims=True)
    var = ((y - mean) ** 2).mean(axis=(2, 3), keepdims=True)
    yn = (y - mean) / jnp.sqrt(var + EPS)
    yn = yn * gamma[None, :, None, None] + beta[None, :, None, None]
    return jnp.maximum(yn, 0.0)


if __name__ == "__main__":
    # Shapes consistent with the module: Upsample(in_channels=4, out_channels=4, size=4)
    N, Cin, H, W = 2, 4, 16, 16
    Cout, K = 4, 4

    key = jax.random.PRNGKey(0)
    kx, kw, kg = jax.random.split(key, 3)
    x = jax.random.normal(kx, (N, Cin, H, W), jnp.float32)
    # ConvTranspose2d weight: (Cin, Cout, K, K), init normal(0, 0.02), no bias
    w_ct = 0.02 * jax.random.normal(kw, (Cin, Cout, K, K), jnp.float32)
    # GroupNorm affine: weight ~ normal(0, 0.02), bias = zeros (PyTorch default)
    gamma = 0.02 * jax.random.normal(kg, (Cout,), jnp.float32)
    beta = jnp.zeros((Cout,), jnp.float32)

    out = upsample_forward(x, w_ct, gamma, beta)
    out = jax.block_until_ready(out)

    ref = reference_forward(x, w_ct, gamma, beta)
    assert out.shape == (N, Cout, 2 * H, 2 * W), out.shape
    max_err = float(jnp.max(jnp.abs(out - ref)))
    assert jnp.allclose(out, ref, atol=1e-4, rtol=1e-4), max_err

    print("KERNEL_OK")
</pallas_src>

<mosaic_0001>
module attributes {stable_mosaic.version = 11 : i64} {
  func.func @_upsample_kernel(%arg0: i32, %arg1: memref<1x8x256xf32, #tpu.memory_space<vmem>>, %arg2: memref<256x512xf32, #tpu.memory_space<vmem>>, %arg3: memref<4xf32, #tpu.memory_space<smem>>, %arg4: memref<4xf32, #tpu.memory_space<smem>>, %arg5: memref<1x4x8x128xf32, #tpu.memory_space<vmem>>) attributes {dimension_semantics = [#tpu.dimension_semantics<parallel>], iteration_bounds = array<i64: 2>, scalar_prefetch = 0 : i64, scratch_operands = 0 : i64, tpu.core_type = #tpu.core_type<tc>, window_params = [{transform_indices = @transform_0, window_bounds = array<i64: 1, 8, 256>}, {pipeline_mode = #tpu.pipeline_mode<synchronous>, transform_indices = @transform_1, window_bounds = array<i64: 256, 512>}, {transform_indices = @transform_2, window_bounds = array<i64: 4>}, {transform_indices = @transform_3, window_bounds = array<i64: 4>}, {transform_indices = @transform_4, window_bounds = array<i64: 1, 4, 8, 128>}]} {
    %c0 = arith.constant 0 : index
    %c0_0 = arith.constant 0 : index
    %c0_1 = arith.constant 0 : index
    %0 = vector.load %arg1[%c0, %c0_0, %c0_1] : memref<1x8x256xf32, #tpu.memory_space<vmem>>, vector<1x8x256xf32>
    %1 = vector.shape_cast %0 : vector<1x8x256xf32> to vector<8x256xf32>
    %c0_2 = arith.constant 0 : index
    %c0_3 = arith.constant 0 : index
    %2 = vector.load %arg2[%c0_2, %c0_3] : memref<256x512xf32, #tpu.memory_space<vmem>>, vector<256x512xf32>
    %cst = arith.constant dense<0.000000e+00> : vector<8x512xf32>
    %3 = tpu.matmul %1, %2, %cst {dimension_numbers = #tpu.dot_dimension_numbers<[1], [0], [0], [1], [0, 0, 1, 1], [], []>} : vector<8x256xf32>, vector<256x512xf32>, vector<8x512xf32> -> vector<8x512xf32>
    %4 = vector.extract_strided_slice %3 {offsets = [0, 0], sizes = [8, 128], strides = [1, 1]} : vector<8x512xf32> to vector<8x128xf32>
    %5 = vector.shape_cast %4 : vector<8x128xf32> to vector<1x8x128xf32>
    %cst_4 = arith.constant dense<0.000000e+00> : vector<1xf32>
    %6 = vector.multi_reduction <add>, %5, %cst_4 [1, 2] : vector<1x8x128xf32> to vector<1xf32>
    %7 = vector.shape_cast %6 : vector<1xf32> to vector<1x1x1xf32>
    %8 = vector.extract %7[0, 0, 0] : f32 from vector<1x1x1xf32>
    %9 = arith.mulf %4, %4 : vector<8x128xf32>
    %10 = vector.shape_cast %9 : vector<8x128xf32> to vector<1x8x128xf32>
    %cst_5 = arith.constant dense<0.000000e+00> : vector<1xf32>
    %11 = vector.multi_reduction <add>, %10, %cst_5 [1, 2] : vector<1x8x128xf32> to vector<1xf32>
    %12 = vector.shape_cast %11 : vector<1xf32> to vector<1x1x1xf32>
    %13 = vector.extract %12[0, 0, 0] : f32 from vector<1x1x1xf32>
    %cst_6 = arith.constant 9.765625E-4 : f32
    %14 = arith.mulf %8, %cst_6 : f32
    %cst_7 = arith.constant 9.765625E-4 : f32
    %15 = arith.mulf %13, %cst_7 : f32
    %16 = arith.mulf %14, %14 : f32
    %17 = arith.subf %15, %16 : f32
    %18 = vector.broadcast %14 : f32 to vector<8x128xf32>
    %19 = arith.subf %4, %18 : vector<8x128xf32>
    %cst_8 = arith.constant 9.99999974E-6 : f32
    %20 = arith.addf %17, %cst_8 : f32
    %21 = math.rsqrt %20 : f32
    %22 = vector.broadcast %21 : f32 to vector<8x128xf32>
    %23 = arith.mulf %19, %22 : vector<8x128xf32>
    %c0_9 = arith.constant 0 : index
    %24 = memref.load %arg3[%c0_9] : memref<4xf32, #tpu.memory_space<smem>>
    %25 = vector.broadcast %24 : f32 to vector<8x128xf32>
    %26 = arith.mulf %23, %25 : vector<8x128xf32>
    %c0_10 = arith.constant 0 : index
    %27 = memref.load %arg4[%c0_10] : memref<4xf32, #tpu.memory_space<smem>>
    %28 = vector.broadcast %27 : f32 to vector<8x128xf32>
    %29 = arith.addf %26, %28 : vector<8x128xf32>
    %cst_11 = arith.constant 0.000000e+00 : f32
    %30 = vector.broadcast %cst_11 : f32 to vector<8x128xf32>
    %31 = arith.maximumf %29, %30 : vector<8x128xf32>
    %c0_12 = arith.constant 0 : index
    %c0_13 = arith.constant 0 : index
    %c0_14 = arith.constant 0 : index
    %c0_15 = arith.constant 0 : index
    %32 = vector.load %arg5[%c0_12, %c0_13, %c0_14, %c0_15] : memref<1x4x8x128xf32, #tpu.memory_space<vmem>>, vector<1x1x8x128xf32>
    %33 = vector.shape_cast %32 : vector<1x1x8x128xf32> to vector<8x128xf32>
    %34 = vector.shape_cast %31 : vector<8x128xf32> to vector<1x1x8x128xf32>
    tpu.vector_store %arg5[%c0_12, %c0_13, %c0_14, %c0_15], %34 {strides = array<i32>} : memref<1x4x8x128xf32, #tpu.memory_space<vmem>>, vector<1x1x8x128xf32>,
    %35 = vector.extract_strided_slice %3 {offsets = [0, 128], sizes = [8, 128], strides = [1, 1]} : vector<8x512xf32> to vector<8x128xf32>
    %36 = vector.shape_cast %35 : vector<8x128xf32> to vector<1x8x128xf32>
    %cst_16 = arith.constant dense<0.000000e+00> : vector<1xf32>
    %37 = vector.multi_reduction <add>, %36, %cst_16 [1, 2] : vector<1x8x128xf32> to vector<1xf32>
    %38 = vector.shape_cast %37 : vector<1xf32> to vector<1x1x1xf32>
    %39 = vector.extract %38[0, 0, 0] : f32 from vector<1x1x1xf32>
    %40 = arith.mulf %35, %35 : vector<8x128xf32>
    %41 = vector.shape_cast %40 : vector<8x128xf32> to vector<1x8x128xf32>
    %cst_17 = arith.constant dense<0.000000e+00> : vector<1xf32>
    %42 = vector.multi_reduction <add>, %41, %cst_17 [1, 2] : vector<1x8x128xf32> to vector<1xf32>
    %43 = vector.shape_cast %42 : vector<1xf32> to vector<1x1x1xf32>
    %44 = vector.extract %43[0, 0, 0] : f32 from vector<1x1x1xf32>
    %cst_18 = arith.constant 9.765625E-4 : f32
    %45 = arith.mulf %39, %cst_18 : f32
    %cst_19 = arith.constant 9.765625E-4 : f32
    %46 = arith.mulf %44, %cst_19 : f32
    %47 = arith.mulf %45, %45 : f32
    %48 = arith.subf %46, %47 : f32
    %49 = vector.broadcast %45 : f32 to vector<8x128xf32>
    %50 = arith.subf %35, %49 : vector<8x128xf32>
    %cst_20 = arith.constant 9.99999974E-6 : f32
    %51 = arith.addf %48, %cst_20 : f32
    %52 = math.rsqrt %51 : f32
    %53 = vector.broadcast %52 : f32 to vector<8x128xf32>
    %54 = arith.mulf %50, %53 : vector<8x128xf32>
    %c1 = arith.constant 1 : index
    %55 = memref.load %arg3[%c1] : memref<4xf32, #tpu.memory_space<smem>>
    %56 = vector.broadcast %55 : f32 to vector<8x128xf32>
    %57 = arith.mulf %54, %56 : vector<8x128xf32>
    %c1_21 = arith.constant 1 : index
    %58 = memref.load %arg4[%c1_21] : memref<4xf32, #tpu.memory_space<smem>>
    %59 = vector.broadcast %58 : f32 to vector<8x128xf32>
    %60 = arith.addf %57, %59 : vector<8x128xf32>
    %cst_22 = arith.constant 0.000000e+00 : f32
    %61 = vector.broadcast %cst_22 : f32 to vector<8x128xf32>
    %62 = arith.maximumf %60, %61 : vector<8x128xf32>
    %c0_23 = arith.constant 0 : index
    %c1_24 = arith.constant 1 : index
    %c0_25 = arith.constant 0 : index
    %c0_26 = arith.constant 0 : index
    %63 = vector.load %arg5[%c0_23, %c1_24, %c0_25, %c0_26] : memref<1x4x8x128xf32, #tpu.memory_space<vmem>>, vector<1x1x8x128xf32>
    %64 = vector.shape_cast %63 : vector<1x1x8x128xf32> to vector<8x128xf32>
    %65 = vector.shape_cast %62 : vector<8x128xf32> to vector<1x1x8x128xf32>
    tpu.vector_store %arg5[%c0_23, %c1_24, %c0_25, %c0_26], %65 {strides = array<i32>} : memref<1x4x8x128xf32, #tpu.memory_space<vmem>>, vector<1x1x8x128xf32>,
    %66 = vector.extract_strided_slice %3 {offsets = [0, 256], sizes = [8, 128], strides = [1, 1]} : vector<8x512xf32> to vector<8x128xf32>
    %67 = vector.shape_cast %66 : vector<8x128xf32> to vector<1x8x128xf32>
    %cst_27 = arith.constant dense<0.000000e+00> : vector<1xf32>
    %68 = vector.multi_reduction <add>, %67, %cst_27 [1, 2] : vector<1x8x128xf32> to vector<1xf32>
    %69 = vector.shape_cast %68 : vector<1xf32> to vector<1x1x1xf32>
    %70 = vector.extract %69[0, 0, 0] : f32 from vector<1x1x1xf32>
    %71 = arith.mulf %66, %66 : vector<8x128xf32>
    %72 = vector.shape_cast %71 : vector<8x128xf32> to vector<1x8x128xf32>
    %cst_28 = arith.constant dense<0.000000e+00> : vector<1xf32>
    %73 = vector.multi_reduction <add>, %72, %cst_28 [1, 2] : vector<1x8x128xf32> to vector<1xf32>
    %74 = vector.shape_cast %73 : vector<1xf32> to vector<1x1x1xf32>
    %75 = vector.extract %74[0, 0, 0] : f32 from vector<1x1x1xf32>
    %cst_29 = arith.constant 9.765625E-4 : f32
    %76 = arith.mulf %70, %cst_29 : f32
    %cst_30 = arith.constant 9.765625E-4 : f32
    %77 = arith.mulf %75, %cst_30 : f32
    %78 = arith.mulf %76, %76 : f32
    %79 = arith.subf %77, %78 : f32
    %80 = vector.broadcast %76 : f32 to vector<8x128xf32>
    %81 = arith.subf %66, %80 : vector<8x128xf32>
    %cst_31 = arith.constant 9.99999974E-6 : f32
    %82 = arith.addf %79, %cst_31 : f32
    %83 = math.rsqrt %82 : f32
    %84 = vector.broadcast %83 : f32 to vector<8x128xf32>
    %85 = arith.mulf %81, %84 : vector<8x128xf32>
    %c2 = arith.constant 2 : index
    %86 = memref.load %arg3[%c2] : memref<4xf32, #tpu.memory_space<smem>>
    %87 = vector.broadcast %86 : f32 to vector<8x128xf32>
    %88 = arith.mulf %85, %87 : vector<8x128xf32>
    %c2_32 = arith.constant 2 : index
    %89 = memref.load %arg4[%c2_32] : memref<4xf32, #tpu.memory_space<smem>>
    %90 = vector.broadcast %89 : f32 to vector<8x128xf32>
    %91 = arith.addf %88, %90 : vector<8x128xf32>
    %cst_33 = arith.constant 0.000000e+00 : f32
    %92 = vector.broadcast %cst_33 : f32 to vector<8x128xf32>
    %93 = arith.maximumf %91, %92 : vector<8x128xf32>
    %c0_34 = arith.constant 0 : index
    %c2_35 = arith.constant 2 : index
    %c0_36 = arith.constant 0 : index
    %c0_37 = arith.constant 0 : index
    %94 = vector.load %arg5[%c0_34, %c2_35, %c0_36, %c0_37] : memref<1x4x8x128xf32, #tpu.memory_space<vmem>>, vector<1x1x8x128xf32>
    %95 = vector.shape_cast %94 : vector<1x1x8x128xf32> to vector<8x128xf32>
    %96 = vector.shape_cast %93 : vector<8x128xf32> to vector<1x1x8x128xf32>
    tpu.vector_store %arg5[%c0_34, %c2_35, %c0_36, %c0_37], %96 {strides = array<i32>} : memref<1x4x8x128xf32, #tpu.memory_space<vmem>>, vector<1x1x8x128xf32>,
    %97 = vector.extract_strided_slice %3 {offsets = [0, 384], sizes = [8, 128], strides = [1, 1]} : vector<8x512xf32> to vector<8x128xf32>
    %98 = vector.shape_cast %97 : vector<8x128xf32> to vector<1x8x128xf32>
    %cst_38 = arith.constant dense<0.000000e+00> : vector<1xf32>
    %99 = vector.multi_reduction <add>, %98, %cst_38 [1, 2] : vector<1x8x128xf32> to vector<1xf32>
    %100 = vector.shape_cast %99 : vector<1xf32> to vector<1x1x1xf32>
    %101 = vector.extract %100[0, 0, 0] : f32 from vector<1x1x1xf32>
    %102 = arith.mulf %97, %97 : vector<8x128xf32>
    %103 = vector.shape_cast %102 : vector<8x128xf32> to vector<1x8x128xf32>
    %cst_39 = arith.constant dense<0.000000e+00> : vector<1xf32>
    %104 = vector.multi_reduction <add>, %103, %cst_39 [1, 2] : vector<1x8x128xf32> to vector<1xf32>
    %105 = vector.shape_cast %104 : vector<1xf32> to vector<1x1x1xf32>
    %106 = vector.extract %105[0, 0, 0] : f32 from vector<1x1x1xf32>
    %cst_40 = arith.constant 9.765625E-4 : f32
    %107 = arith.mulf %101, %cst_40 : f32
    %cst_41 = arith.constant 9.765625E-4 : f32
    %108 = arith.mulf %106, %cst_41 : f32
    %109 = arith.mulf %107, %107 : f32
    %110 = arith.subf %108, %109 : f32
    %111 = vector.broadcast %107 : f32 to vector<8x128xf32>
    %112 = arith.subf %97, %111 : vector<8x128xf32>
    %cst_42 = arith.constant 9.99999974E-6 : f32
    %113 = arith.addf %110, %cst_42 : f32
    %114 = math.rsqrt %113 : f32
    %115 = vector.broadcast %114 : f32 to vector<8x128xf32>
    %116 = arith.mulf %112, %115 : vector<8x128xf32>
    %c3 = arith.constant 3 : index
    %117 = memref.load %arg3[%c3] : memref<4xf32, #tpu.memory_space<smem>>
    %118 = vector.broadcast %117 : f32 to vector<8x128xf32>
    %119 = arith.mulf %116, %118 : vector<8x128xf32>
    %c3_43 = arith.constant 3 : index
    %120 = memref.load %arg4[%c3_43] : memref<4xf32, #tpu.memory_space<smem>>
    %121 = vector.broadcast %120 : f32 to vector<8x128xf32>
    %122 = arith.addf %119, %121 : vector<8x128xf32>
    %cst_44 = arith.constant 0.000000e+00 : f32
    %123 = vector.broadcast %cst_44 : f32 to vector<8x128xf32>
    %124 = arith.maximumf %122, %123 : vector<8x128xf32>
    %c0_45 = arith.constant 0 : index
    %c3_46 = arith.constant 3 : index
    %c0_47 = arith.constant 0 : index
    %c0_48 = arith.constant 0 : index
    %125 = vector.load %arg5[%c0_45, %c3_46, %c0_47, %c0_48] : memref<1x4x8x128xf32, #tpu.memory_space<vmem>>, vector<1x1x8x128xf32>
    %126 = vector.shape_cast %125 : vector<1x1x8x128xf32> to vector<8x128xf32>
    %127 = vector.shape_cast %124 : vector<8x128xf32> to vector<1x1x8x128xf32>
    tpu.vector_store %arg5[%c0_45, %c3_46, %c0_47, %c0_48], %127 {strides = array<i32>} : memref<1x4x8x128xf32, #tpu.memory_space<vmem>>, vector<1x1x8x128xf32>,
    return
  }
  func.func @transform_0(%arg0: i32) -> (i32, i32, i32) {
    %c0_i32 = arith.constant 0 : i32
    %c0_i32_0 = arith.constant 0 : i32
    %c0_i32_1 = arith.constant 0 : i32
    return %arg0, %c0_i32, %c0_i32_0 : i32, i32, i32
  }
  func.func @transform_1(%arg0: i32) -> (i32, i32) {
    %c0_i32 = arith.constant 0 : i32
    %c0_i32_0 = arith.constant 0 : i32
    %c0_i32_1 = arith.constant 0 : i32
    return %c0_i32, %c0_i32_0 : i32, i32
  }
  func.func @transform_2(%arg0: i32) -> i32 {
    %c0_i32 = arith.constant 0 : i32
    %c0_i32_0 = arith.constant 0 : i32
    return %c0_i32 : i32
  }
  func.func @transform_3(%arg0: i32) -> i32 {
    %c0_i32 = arith.constant 0 : i32
    %c0_i32_0 = arith.constant 0 : i32
    return %c0_i32 : i32
  }
  func.func @transform_4(%arg0: i32) -> (i32, i32, i32, i32) {
    %c0_i32 = arith.constant 0 : i32
    %c0_i32_0 = arith.constant 0 : i32
    %c0_i32_1 = arith.constant 0 : i32
    %c0_i32_2 = arith.constant 0 : i32
    return %arg0, %c0_i32, %c0_i32_0, %c0_i32_1 : i32, i32, i32, i32
  }
}

</mosaic_0001>

<llo_original>
// kernel: upsample_forward.1
$region0: #{upsample_forward.1}
  #allocation0 [shape = 'u32[]', space=smem, size = 0x4, offset = 0x4, fixed_abs, tag = 'smem constant byte address 0x4 - core index']
  #allocation1 [shape = 'u32[144,128]{1,0:T(1,128)}', space=vmem, size = 0x12000, scoped, tag = 'internal scratch']
  %s0 = inlined_call_operand.vmem [shape: f32[2,8,256], index: 0, kind: input, shape index: {}]
  %s1 = inlined_call_operand.vmem [shape: f32[256,512], index: 1, kind: input, shape index: {}]
  %s2 = inlined_call_operand.vmem [shape: f32[4], index: 2, kind: input, shape index: {}]
  %s3 = inlined_call_operand.vmem [shape: f32[4], index: 3, kind: input, shape index: {}]
  %s4 = inlined_call_operand.vmem [shape: f32[2,4,8,128], index: 4, kind: output, shape index: {}]
  %s5 = sld [smem:[#allocation0]]
  $region57: #{upsample_forward.1} parent=0
    _
  %s7 = ssub.s32 1, %s5
  %s8 = scalar_select 0, %s7, %s5
  $region1: #{upsample_forward.1} parent=0
    #allocation2 [shape = 'u8[512]{0}', space=smem, size = 0x200, scoped, tag = 'input window, operand 2, single buffered']
    #allocation3 [shape = 's32[2]{0}', space=sflag, size = 0x8, scoped, tag = 'scoped memory for upsample_forward.1']
    #allocation4 [shape = 'u8[512]{0}', space=smem, size = 0x200, scoped, tag = 'input window, operand 3, single buffered']
    #allocation5 [shape = 's32[1]{0}', space=sflag, size = 0x4, scoped, tag = 'scoped memory for upsample_forward.1']
    %9 = vsyncpa [#allocation3], 0
    %10 = vsyncpa [#allocation5], 0
    loop: start=0, step=1, limit=4
    $region2: #{upsample_forward.1} parent=1 // loop_pre_header
      _
    $region3: #{upsample_forward.1} parent=1 // loop_header
      %s12 = sphi 0, %s16
      %p13 = scmp.ge.s32.totalorder %s12, 4
      %s22 = sphi 0, %s24
      %s25 = sphi 0, %s22
      %s26 = sphi 0, %s25
      %s42 = sphi 0, %s26
      %s46 = sphi 0, %s46
      %s48 = sphi 0, %s46
      %s49 = sphi 0, %s48
      %s63 = sphi 0, %s49
      %s67 = sphi 0, %s67
      %s69 = sphi 0, %s67
      %s70 = sphi 0, %s69
      %s84 = sphi 0, %s70
      %s88 = sphi 0, %s88
      %s90 = sphi 0, %s88
      %s91 = sphi 0, %s90
      %s105 = sphi 0, %s91
      %s111 = sphi 0, %s113
      %s114 = sphi 0, %s111
      %s115 = sphi 0, %s114
      %s131 = sphi 0, %s115
    $region4: #{upsample_forward.1} parent=1 // loop_header_branch
      %15 = sbr.rel (%p13) target = $region8
    $region5: #{upsample_forward.1} parent=1 // loop_body
      %s17 = ssub.s32 %s12, 1
      %s18 = ssub.s32 %s12, 2
      %s19 = sadd.s32 %s12, 1
      %s20 = ssub.s32 %s12, %s19
      %p21 = scmp.eq.s32.totalorder %s20, 0
      %s23 = sadd.s32 %s22, 1
      %s24 = scalar_select %p21, %s22, %s23
      %p27 = pneg %p21
      %p28 = scmp.eq.s32.totalorder %s12, 1
      %p29 = por %p27, %p28
      %p30 = scmp.ne.s32.totalorder %s22, %s25
      %p31 = scmp.eq.s32.totalorder %s12, 0
      %p32 = por %p30, %p31
      %p33 = scmp.ne.s32.totalorder %s22, %s25
      %p34 = scmp.eq.s32.totalorder %s17, 1
      %p35 = por %p33, %p34
      %p36 = scmp.ne.s32.totalorder %s25, %s26
      %p37 = scmp.eq.s32.totalorder %s17, 0
      %p38 = por %p36, %p37
      %p39 = scmp.ne.s32.totalorder %s25, %s26
      %p40 = scmp.eq.s32.totalorder %s18, 1
      %p41 = por %p39, %p40
      %p43 = scmp.ne.s32.totalorder %s26, %s42
      %p44 = scmp.eq.s32.totalorder %s18, 0
      %p45 = por %p43, %p44
      %s47 = sadd.s32 %s46, 1
      %p50 = scmp.eq.s32.totalorder %s12, 1
      %p51 = scmp.ne.s32.totalorder %s46, %s48
      %p52 = scmp.eq.s32.totalorder %s12, 0
      %p53 = por %p51, %p52
      %p54 = scmp.ne.s32.totalorder %s46, %s48
      %p55 = scmp.eq.s32.totalorder %s17, 1
      %p56 = por %p54, %p55
      %p57 = scmp.ne.s32.totalorder %s48, %s49
      %p58 = scmp.eq.s32.totalorder %s17, 0
      %p59 = por %p57, %p58
      %p60 = scmp.ne.s32.totalorder %s48, %s49
      %p61 = scmp.eq.s32.totalorder %s18, 1
      %p62 = por %p60, %p61
      %p64 = scmp.ne.s32.totalorder %s49, %s63
      %p65 = scmp.eq.s32.totalorder %s18, 0
      %p66 = por %p64, %p65
      %s68 = sadd.s32 %s67, 1
      %p71 = scmp.eq.s32.totalorder %s12, 1
      %p72 = scmp.ne.s32.totalorder %s67, %s69
      %p73 = scmp.eq.s32.totalorder %s12, 0
      %p74 = por %p72, %p73
      %p75 = scmp.ne.s32.totalorder %s67, %s69
      %p76 = scmp.eq.s32.totalorder %s17, 1
      %p77 = por %p75, %p76
      %p78 = scmp.ne.s32.totalorder %s69, %s70
      %p79 = scmp.eq.s32.totalorder %s17, 0
      %p80 = por %p78, %p79
      %p81 = scmp.ne.s32.totalorder %s69, %s70
      %p82 = scmp.eq.s32.totalorder %s18, 1
      %p83 = por %p81, %p82
      %p85 = scmp.ne.s32.totalorder %s70, %s84
      %p86 = scmp.eq.s32.totalorder %s18, 0
      %p87 = por %p85, %p86
      %s89 = sadd.s32 %s88, 1
      %p92 = scmp.eq.s32.totalorder %s12, 1
      %p93 = scmp.ne.s32.totalorder %s88, %s90
      %p94 = scmp.eq.s32.totalorder %s12, 0
      %p95 = por %p93, %p94
      %p96 = scmp.ne.s32.totalorder %s88, %s90
      %p97 = scmp.eq.s32.totalorder %s17, 1
      %p98 = por %p96, %p97
      %p99 = scmp.ne.s32.totalorder %s90, %s91
      %p100 = scmp.eq.s32.totalorder %s17, 0
      %p101 = por %p99, %p100
      %p102 = scmp.ne.s32.totalorder %s90, %s91
      %p103 = scmp.eq.s32.totalorder %s18, 1
      %p104 = por %p102, %p103
      %p106 = scmp.ne.s32.totalorder %s91, %s105
      %p107 = scmp.eq.s32.totalorder %s18, 0
      %p108 = por %p106, %p107
      %s109 = ssub.s32 %s12, %s19
      %p110 = scmp.eq.s32.totalorder %s109, 0
      %s112 = sadd.s32 %s111, 1
      %s113 = scalar_select %p110, %s111, %s112
      %p116 = pneg %p110
      %p117 = scmp.eq.s32.totalorder %s12, 1
      %p118 = por %p116, %p117
      %p119 = scmp.ne.s32.totalorder %s111, %s114
      %p120 = scmp.eq.s32.totalorder %s12, 0
      %p121 = por %p119, %p120
      %p122 = scmp.ne.s32.totalorder %s111, %s114
      %p123 = scmp.eq.s32.totalorder %s17, 1
      %p124 = por %p122, %p123
      %p125 = scmp.ne.s32.totalorder %s114, %s115
      %p126 = scmp.eq.s32.totalorder %s17, 0
      %p127 = por %p125, %p126
      %p128 = scmp.ne.s32.totalorder %s114, %s115
      %p129 = scmp.eq.s32.totalorder %s18, 1
      %p130 = por %p128, %p129
      %p132 = scmp.ne.s32.totalorder %s115, %s131
      %p133 = scmp.eq.s32.totalorder %s18, 0
      %p134 = por %p132, %p133
      %p135 = scmp.le.s32.totalorder 1, %s12
      %p136 = scmp.lt.s32.totalorder %s12, 3
      %p137 = pnand %p135, %p136
      %p138 = pneg %p137
      // Predicated region
      $region9: #{upsample_forward.1} parent=5 // pred_check
        _
      $region10: #{upsample_forward.1} parent=5 // pred_check_branch
        %140 = sbr.rel (%p137) target = $region12
      $region11: #{upsample_forward.1} parent=5 // pred_region
        %s141 = ssub.s32 %s12, 1
        // Predicated region
        $region13: #{upsample_forward.1} parent=11 // pred_check
          %p142 = pneg %p59
        $region14: #{upsample_forward.1} parent=11 // pred_check_branch
          %144 = sbr.rel (%p142) target = $region16
        $region15: #{upsample_forward.1} parent=11 // pred_region
          _
        $region16: #{upsample_forward.1} parent=11 // pred_fallthru
          _
        // Predicated region
        $region17: #{upsample_forward.1} parent=11 // pred_check
          %p145 = pneg %p80
        $region18: #{upsample_forward.1} parent=11 // pred_check_branch
          %147 = sbr.rel (%p145) target = $region20
        $region19: #{upsample_forward.1} parent=11 // pred_region
          %s149 = ssub.s32 16, 16
          %150 = vsyncadd [#allocation3], %s149
          %s152 = sshll.u32 %s2, 4
          %s153 = int_to_ptr.vmem [resolvable:$true] %s152
          %155 = dma.vmem_to_smem %s153, 16, [#allocation2], [#allocation3]
        $region20: #{upsample_forward.1} parent=11 // pred_fallthru
          _
        // Predicated region
        $region21: #{upsample_forward.1} parent=11 // pred_check
          %p156 = pneg %p101
        $region22: #{upsample_forward.1} parent=11 // pred_check_branch
          %158 = sbr.rel (%p156) target = $region24
        $region23: #{upsample_forward.1} parent=11 // pred_region
          %s160 = ssub.s32 16, 16
          %161 = vsyncadd [#allocation5], %s160
          %s163 = sshll.u32 %s3, 4
          %s164 = int_to_ptr.vmem [resolvable:$true] %s163
          %166 = dma.vmem_to_smem %s164, 16, [#allocation4], [#allocation5]
        $region24: #{upsample_forward.1} parent=11 // pred_fallthru
          _
      $region12: #{upsample_forward.1} parent=5 // pred_fallthru
        _
      %p167 = scmp.lt.s32.totalorder %s12, 2
      // Predicated region
      $region25: #{upsample_forward.1} parent=5 // pred_check
        %p168 = pneg %p167
      $region26: #{upsample_forward.1} parent=5 // pred_check_branch
        %170 = sbr.rel (%p168) target = $region28
      $region27: #{upsample_forward.1} parent=5 // pred_region
        // Predicated region
        $region29: #{upsample_forward.1} parent=27 // pred_check
          %p171 = pneg %p32
        $region30: #{upsample_forward.1} parent=27 // pred_check_branch
          %173 = sbr.rel (%p171) target = $region32
        $region31: #{upsample_forward.1} parent=27 // pred_region
          %p174 = scmp.lt.s32.totalorder %s12, 1
          %s175 = scalar_select %p174, %s12, 1
          %s176 = smul.addr %s175, 2
          %s177 = smul.addr %s176, 8
          %s178 = scalar_lea.vmem %s0, %s177
        $region32: #{upsample_forward.1} parent=27 // pred_fallthru
          _
      $region28: #{upsample_forward.1} parent=5 // pred_fallthru
        _
      %p179 = scmp.le.s32.totalorder 1, %s12
      %p180 = scmp.lt.s32.totalorder %s12, 3
      %p181 = pnand %p179, %p180
      %p182 = pneg %p181
      // Predicated region
      $region33: #{upsample_forward.1} parent=5 // pred_check
        _
      $region34: #{upsample_forward.1} parent=5 // pred_check_branch
        %184 = sbr.rel (%p181) target = $region36
      $region35: #{upsample_forward.1} parent=5 // pred_region
        %s185 = ssub.s32 %s12, 1
        // Predicated region
        $region37: #{upsample_forward.1} parent=35 // pred_check
          %p186 = pneg %p80
        $region38: #{upsample_forward.1} parent=35 // pred_check_branch
          %188 = sbr.rel (%p186) target = $region40
        $region39: #{upsample_forward.1} parent=35 // pred_region
          %189 = dma.done [#allocation3], 16
        $region40: #{upsample_forward.1} parent=35 // pred_fallthru
          _
        // Predicated region
        $region41: #{upsample_forward.1} parent=35 // pred_check
          %p190 = pneg %p101
        $region42: #{upsample_forward.1} parent=35 // pred_check_branch
          %192 = sbr.rel (%p190) target = $region44
        $region43: #{upsample_forward.1} parent=35 // pred_region
          %193 = dma.done [#allocation5], 16
        $region44: #{upsample_forward.1} parent=35 // pred_fallthru
          _
        %194 = sfence
        %p195 = scmp.lt.s32.totalorder %s17, 1
        %s196 = scalar_select %p195, %s17, 1
        %s197 = smul.addr %s196, 2
        %s198 = smul.addr %s197, 8
        %s199 = scalar_lea.vmem %s0, %s198
        %p200 = pneg %p38
        %p201 = pneg %p35
        %p202 = pneg %p59
        %p203 = pneg %p56
        %p204 = pneg %p80
        %p205 = pneg %p77
        %p206 = pneg %p101
        %p207 = pneg %p98
        %p208 = pneg %p127
        %p209 = pneg %p124
        %p210 = scmp.lt.s32.totalorder %s17, 1
        %s211 = scalar_select %p210, %s17, 1
        %s212 = smul.addr %s211, 4
        %s213 = smul.addr %s212, 8
        %s214 = scalar_lea.vmem %s4, %s213
        %p215 = scmp.lt.s32.totalorder %s17, 1
        %s216 = scalar_select %p215, %s17, 1
        %s217 = smul.addr %s216, 2
        %s218 = smul.addr %s217, 8
        %s219 = scalar_lea.vmem %s0, %s218
        %p220 = scmp.lt.s32.totalorder %s17, 1
        %s221 = scalar_select %p220, %s17, 1
        %s222 = smul.addr %s221, 4
        %s223 = smul.addr %s222, 8
        %s224 = scalar_lea.vmem %s4, %s223
        %v225 = vld [vmem:[%s219] sm:$0xff]
        %v226 = vld [vmem:[%s219 + $0x8] sm:$0xff]
        %v227 = vld [vmem:[%s1] sm:$0xff]
        %v228 = vld [vmem:[%s1 + $0x8] sm:$0xff]
        %v229 = vld [vmem:[%s1 + $0x10] sm:$0xff]
        %v230 = vld [vmem:[%s1 + $0x18] sm:$0xff]
        %v231 = vld [vmem:[%s1 + $0x20] sm:$0xff]
        %v232 = vld [vmem:[%s1 + $0x28] sm:$0xff]
        %v233 = vld [vmem:[%s1 + $0x30] sm:$0xff]
        %v234 = vld [vmem:[%s1 + $0x38] sm:$0xff]
        %v235 = vld [vmem:[%s1 + $0x40] sm:$0xff]
        %v236 = vld [vmem:[%s1 + $0x48] sm:$0xff]
        %v237 = vld [vmem:[%s1 + $0x50] sm:$0xff]
        %v238 = vld [vmem:[%s1 + $0x58] sm:$0xff]
        %v239 = vld [vmem:[%s1 + $0x60] sm:$0xff]
        %v240 = vld [vmem:[%s1 + $0x68] sm:$0xff]
        %v241 = vld [vmem:[%s1 + $0x70] sm:$0xff]
        %v242 = vld [vmem:[%s1 + $0x78] sm:$0xff]
        %v243 = vld [vmem:[%s1 + $0x80] sm:$0xff]
        %v244 = vld [vmem:[%s1 + $0x88] sm:$0xff]
        %v245 = vld [vmem:[%s1 + $0x90] sm:$0xff]
        %v246 = vld [vmem:[%s1 + $0x98] sm:$0xff]
        %v247 = vld [vmem:[%s1 + $0xa0] sm:$0xff]
        %v248 = vld [vmem:[%s1 + $0xa8] sm:$0xff]
        %v249 = vld [vmem:[%s1 + $0xb0] sm:$0xff]
        %v250 = vld [vmem:[%s1 + $0xb8] sm:$0xff]
        %v251 = vld [vmem:[%s1 + $0xc0] sm:$0xff]
        %v252 = vld [vmem:[%s1 + $0xc8] sm:$0xff]
        %v253 = vld [vmem:[%s1 + $0xd0] sm:$0xff]
        %v254 = vld [vmem:[%s1 + $0xd8] sm:$0xff]
        %v255 = vld [vmem:[%s1 + $0xe0] sm:$0xff]
        %v256 = vld [vmem:[%s1 + $0xe8] sm:$0xff]
        %v257 = vld [vmem:[%s1 + $0xf0] sm:$0xff]
        %v258 = vld [vmem:[%s1 + $0xf8] sm:$0xff]
        %v259 = vld [vmem:[%s1 + $0x100] sm:$0xff]
        %v260 = vld [vmem:[%s1 + $0x108] sm:$0xff]
        %v261 = vld [vmem:[%s1 + $0x110] sm:$0xff]
        %v262 = vld [vmem:[%s1 + $0x118] sm:$0xff]
        %v263 = vld [vmem:[%s1 + $0x120] sm:$0xff]
        %v264 = vld [vmem:[%s1 + $0x128] sm:$0xff]
        %v265 = vld [vmem:[%s1 + $0x130] sm:$0xff]
        %v266 = vld [vmem:[%s1 + $0x138] sm:$0xff]
        %v267 = vld [vmem:[%s1 + $0x140] sm:$0xff]
        %v268 = vld [vmem:[%s1 + $0x148] sm:$0xff]
        %v269 = vld [vmem:[%s1 + $0x150] sm:$0xff]
        %v270 = vld [vmem:[%s1 + $0x158] sm:$0xff]
        %v271 = vld [vmem:[%s1 + $0x160] sm:$0xff]
        %v272 = vld [vmem:[%s1 + $0x168] sm:$0xff]
        %v273 = vld [vmem:[%s1 + $0x170] sm:$0xff]
        %v274 = vld [vmem:[%s1 + $0x178] sm:$0xff]
        %v275 = vld [vmem:[%s1 + $0x180] sm:$0xff]
        %v276 = vld [vmem:[%s1 + $0x188] sm:$0xff]
        %v277 = vld [vmem:[%s1 + $0x190] sm:$0xff]
        %v278 = vld [vmem:[%s1 + $0x198] sm:$0xff]
        %v279 = vld [vmem:[%s1 + $0x1a0] sm:$0xff]
        %v280 = vld [vmem:[%s1 + $0x1a8] sm:$0xff]
        %v281 = vld [vmem:[%s1 + $0x1b0] sm:$0xff]
        %v282 = vld [vmem:[%s1 + $0x1b8] sm:$0xff]
        %v283 = vld [vmem:[%s1 + $0x1c0] sm:$0xff]
        %v284 = vld [vmem:[%s1 + $0x1c8] sm:$0xff]
        %v285 = vld [vmem:[%s1 + $0x1d0] sm:$0xff]
        %v286 = vld [vmem:[%s1 + $0x1d8] sm:$0xff]
        %v287 = vld [vmem:[%s1 + $0x1e0] sm:$0xff]
        %v288 = vld [vmem:[%s1 + $0x1e8] sm:$0xff]
        %v289 = vld [vmem:[%s1 + $0x1f0] sm:$0xff]
        %v290 = vld [vmem:[%s1 + $0x1f8] sm:$0xff]
        %v291 = vld [vmem:[%s1 + $0x200] sm:$0xff]
        %v292 = vld [vmem:[%s1 + $0x208] sm:$0xff]
        %v293 = vld [vmem:[%s1 + $0x210] sm:$0xff]
        %v294 = vld [vmem:[%s1 + $0x218] sm:$0xff]
        %v295 = vld [vmem:[%s1 + $0x220] sm:$0xff]
        %v296 = vld [vmem:[%s1 + $0x228] sm:$0xff]
        %v297 = vld [vmem:[%s1 + $0x230] sm:$0xff]
        %v298 = vld [vmem:[%s1 + $0x238] sm:$0xff]
        %v299 = vld [vmem:[%s1 + $0x240] sm:$0xff]
        %v300 = vld [vmem:[%s1 + $0x248] sm:$0xff]
        %v301 = vld [vmem:[%s1 + $0x250] sm:$0xff]
        %v302 = vld [vmem:[%s1 + $0x258] sm:$0xff]
        %v303 = vld [vmem:[%s1 + $0x260] sm:$0xff]
        %v304 = vld [vmem:[%s1 + $0x268] sm:$0xff]
        %v305 = vld [vmem:[%s1 + $0x270] sm:$0xff]
        %v306 = vld [vmem:[%s1 + $0x278] sm:$0xff]
        %v307 = vld [vmem:[%s1 + $0x280] sm:$0xff]
        %v308 = vld [vmem:[%s1 + $0x288] sm:$0xff]
        %v309 = vld [vmem:[%s1 + $0x290] sm:$0xff]
        %v310 = vld [vmem:[%s1 + $0x298] sm:$0xff]
        %v311 = vld [vmem:[%s1 + $0x2a0] sm:$0xff]
        %v312 = vld [vmem:[%s1 + $0x2a8] sm:$0xff]
        %v313 = vld [vmem:[%s1 + $0x2b0] sm:$0xff]
        %v314 = vld [vmem:[%s1 + $0x2b8] sm:$0xff]
        %v315 = vld [vmem:[%s1 + $0x2c0] sm:$0xff]
        %v316 = vld [vmem:[%s1 + $0x2c8] sm:$0xff]
        %v317 = vld [vmem:[%s1 + $0x2d0] sm:$0xff]
        %v318 = vld [vmem:[%s1 + $0x2d8] sm:$0xff]
        %v319 = vld [vmem:[%s1 + $0x2e0] sm:$0xff]
        %v320 = vld [vmem:[%s1 + $0x2e8] sm:$0xff]
        %v321 = vld [vmem:[%s1 + $0x2f0] sm:$0xff]
        %v322 = vld [vmem:[%s1 + $0x2f8] sm:$0xff]
        %v323 = vld [vmem:[%s1 + $0x300] sm:$0xff]
        %v324 = vld [vmem:[%s1 + $0x308] sm:$0xff]
        %v325 = vld [vmem:[%s1 + $0x310] sm:$0xff]
        %v326 = vld [vmem:[%s1 + $0x318] sm:$0xff]
        %v327 = vld [vmem:[%s1 + $0x320] sm:$0xff]
        %v328 = vld [vmem:[%s1 + $0x328] sm:$0xff]
        %v329 = vld [vmem:[%s1 + $0x330] sm:$0xff]
        %v330 = vld [vmem:[%s1 + $0x338] sm:$0xff]
        %v331 = vld [vmem:[%s1 + $0x340] sm:$0xff]
        %v332 = vld [vmem:[%s1 + $0x348] sm:$0xff]
        %v333 = vld [vmem:[%s1 + $0x350] sm:$0xff]
        %v334 = vld [vmem:[%s1 + $0x358] sm:$0xff]
        %v335 = vld [vmem:[%s1 + $0x360] sm:$0xff]
        %v336 = vld [vmem:[%s1 + $0x368] sm:$0xff]
        %v337 = vld [vmem:[%s1 + $0x370] sm:$0xff]
        %v338 = vld [vmem:[%s1 + $0x378] sm:$0xff]
        %v339 = vld [vmem:[%s1 + $0x380] sm:$0xff]
        %v340 = vld [vmem:[%s1 + $0x388] sm:$0xff]
        %v341 = vld [vmem:[%s1 + $0x390] sm:$0xff]
        %v342 = vld [vmem:[%s1 + $0x398] sm:$0xff]
        %v343 = vld [vmem:[%s1 + $0x3a0] sm:$0xff]
        %v344 = vld [vmem:[%s1 + $0x3a8] sm:$0xff]
        %v345 = vld [vmem:[%s1 + $0x3b0] sm:$0xff]
        %v346 = vld [vmem:[%s1 + $0x3b8] sm:$0xff]
        %v347 = vld [vmem:[%s1 + $0x3c0] sm:$0xff]
        %v348 = vld [vmem:[%s1 + $0x3c8] sm:$0xff]
        %v349 = vld [vmem:[%s1 + $0x3d0] sm:$0xff]
        %v350 = vld [vmem:[%s1 + $0x3d8] sm:$0xff]
        %v351 = vld [vmem:[%s1 + $0x3e0] sm:$0xff]
        %v352 = vld [vmem:[%s1 + $0x3e8] sm:$0xff]
        %v353 = vld [vmem:[%s1 + $0x3f0] sm:$0xff]
        %v354 = vld [vmem:[%s1 + $0x3f8] sm:$0xff]
        %355 = vmatprep.subr.mxu0 %v228
        %356 = vmatpush1.msra.mxu0 %v227
        %357 = vmatprep.subr.mxu0 %v232
        %358 = vmatpush1.msra.mxu0 %v231
        %359 = vmatprep.subr.mxu0 %v236
        %360 = vmatpush1.msra.mxu0 %v235
        %361 = vmatprep.subr.mxu0 %v240
        %362 = vmatpush1.msra.mxu0 %v239
        %363 = vmatprep.subr.mxu0 %v244
        %364 = vmatpush1.msra.mxu0 %v243
        %365 = vmatprep.subr.mxu0 %v248
        %366 = vmatpush1.msra.mxu0 %v247
        %367 = vmatprep.subr.mxu0 %v252
        %368 = vmatpush1.msra.mxu0 %v251
        %369 = vmatprep.subr.mxu0 %v256
        %370 = vmatpush1.msra.mxu0 %v255
        %371 = vmatprep.subr.mxu0 %v260
        %372 = vmatpush1.msra.mxu0 %v259
        %373 = vmatprep.subr.mxu0 %v264
        %374 = vmatpush1.msra.mxu0 %v263
        %375 = vmatprep.subr.mxu0 %v268
        %376 = vmatpush1.msra.mxu0 %v267
        %377 = vmatprep.subr.mxu0 %v272
        %378 = vmatpush1.msra.mxu0 %v271
        %379 = vmatprep.subr.mxu0 %v276
        %380 = vmatpush1.msra.mxu0 %v275
        %381 = vmatprep.subr.mxu0 %v280
        %382 = vmatpush1.msra.mxu0 %v279
        %383 = vmatprep.subr.mxu0 %v284
        %384 = vmatpush1.msra.mxu0 %v283
        %385 = vmatprep.subr.mxu0 %v288
        %386 = vmatpush1.msra.mxu0 %v287
        %387 = vmatprep.subr.mxu0 %v292
        %388 = vmatpush1.msra.mxu0 %v291
        %389 = vmatprep.subr.mxu0 %v296
        %390 = vmatpush1.msra.mxu0 %v295
        %391 = vmatprep.subr.mxu0 %v300
        %392 = vmatpush1.msra.mxu0 %v299
        %393 = vmatprep.subr.mxu0 %v304
        %394 = vmatpush1.msra.mxu0 %v303
        %395 = vmatprep.subr.mxu0 %v308
        %396 = vmatpush1.msra.mxu0 %v307
        %397 = vmatprep.subr.mxu0 %v312
        %398 = vmatpush1.msra.mxu0 %v311
        %399 = vmatprep.subr.mxu0 %v316
        %400 = vmatpush1.msra.mxu0 %v315
        %401 = vmatprep.subr.mxu0 %v320
        %402 = vmatpush1.msra.mxu0 %v319
        %403 = vmatprep.subr.mxu0 %v324
        %404 = vmatpush1.msra.mxu0 %v323
        %405 = vmatprep.subr.mxu0 %v328
        %406 = vmatpush1.msra.mxu0 %v327
        %407 = vmatprep.subr.mxu0 %v332
        %408 = vmatpush1.msra.mxu0 %v331
        %409 = vmatprep.subr.mxu0 %v336
        %410 = vmatpush1.msra.mxu0 %v335
        %411 = vmatprep.subr.mxu0 %v340
        %412 = vmatpush1.msra.mxu0 %v339
        %413 = vmatprep.subr.mxu0 %v344
        %414 = vmatpush1.msra.mxu0 %v343
        %415 = vmatprep.subr.mxu0 %v348
        %416 = vmatpush1.msra.mxu0 %v347
        %417 = vmatprep.subr.mxu0 %v352
        %418 = vmatpush1.msra.mxu0 %v351
        %419 = vmatprep.mubr.f32.mxu0 %v226
        %420 = vmatmul.mubr.f32.gmra.mrb[0].mxu0 %v225
        %v421 = vpop.f32.mrb[0].mxu0
        %v422 = vadd.f32 0.0, %v421
        %v423 = vpop.f32.mrb[0].mxu0
        %v424 = vadd.f32 0.0, %v423
        %425 = vdwg.mxu0
        %426 = vmatprep.subr.mxu0 %v230
        %427 = vmatpush1.msra.mxu0 %v229
        %428 = vmatprep.subr.mxu0 %v234
        %429 = vmatpush1.msra.mxu0 %v233
        %430 = vmatprep.subr.mxu0 %v238
        %431 = vmatpush1.msra.mxu0 %v237
        %432 = vmatprep.subr.mxu0 %v242
        %433 = vmatpush1.msra.mxu0 %v241
        %434 = vmatprep.subr.mxu0 %v246
        %435 = vmatpush1.msra.mxu0 %v245
        %436 = vmatprep.subr.mxu0 %v250
        %437 = vmatpush1.msra.mxu0 %v249
        %438 = vmatprep.subr.mxu0 %v254
        %439 = vmatpush1.msra.mxu0 %v253
        %440 = vmatprep.subr.mxu0 %v258
        %441 = vmatpush1.msra.mxu0 %v257
        %442 = vmatprep.subr.mxu0 %v262
        %443 = vmatpush1.msra.mxu0 %v261
        %444 = vmatprep.subr.mxu0 %v266
        %445 = vmatpush1.msra.mxu0 %v265
        %446 = vmatprep.subr.mxu0 %v270
        %447 = vmatpush1.msra.mxu0 %v269
        %448 = vmatprep.subr.mxu0 %v274
        %449 = vmatpush1.msra.mxu0 %v273
        %450 = vmatprep.subr.mxu0 %v278
        %451 = vmatpush1.msra.mxu0 %v277
        %452 = vmatprep.subr.mxu0 %v282
        %453 = vmatpush1.msra.mxu0 %v281
        %454 = vmatprep.subr.mxu0 %v286
        %455 = vmatpush1.msra.mxu0 %v285
        %456 = vmatprep.subr.mxu0 %v290
        %457 = vmatpush1.msra.mxu0 %v289
        %458 = vmatprep.subr.mxu0 %v294
        %459 = vmatpush1.msra.mxu0 %v293
        %460 = vmatprep.subr.mxu0 %v298
        %461 = vmatpush1.msra.mxu0 %v297
        %462 = vmatprep.subr.mxu0 %v302
        %463 = vmatpush1.msra.mxu0 %v301
        %464 = vmatprep.subr.mxu0 %v306
        %465 = vmatpush1.msra.mxu0 %v305
        %466 = vmatprep.subr.mxu0 %v310
        %467 = vmatpush1.msra.mxu0 %v309
        %468 = vmatprep.subr.mxu0 %v314
        %469 = vmatpush1.msra.mxu0 %v313
        %470 = vmatprep.subr.mxu0 %v318
        %471 = vmatpush1.msra.mxu0 %v317
        %472 = vmatprep.subr.mxu0 %v322
        %473 = vmatpush1.msra.mxu0 %v321
        %474 = vmatprep.subr.mxu0 %v326
        %475 = vmatpush1.msra.mxu0 %v325
        %476 = vmatprep.subr.mxu0 %v330
        %477 = vmatpush1.msra.mxu0 %v329
        %478 = vmatprep.subr.mxu0 %v334
        %479 = vmatpush1.msra.mxu0 %v333
        %480 = vmatprep.subr.mxu0 %v338
        %481 = vmatpush1.msra.mxu0 %v337
        %482 = vmatprep.subr.mxu0 %v342
        %483 = vmatpush1.msra.mxu0 %v341
        %484 = vmatprep.subr.mxu0 %v346
        %485 = vmatpush1.msra.mxu0 %v345
        %486 = vmatprep.subr.mxu0 %v350
        %487 = vmatpush1.msra.mxu0 %v349
        %488 = vmatprep.subr.mxu0 %v354
        %489 = vmatpush1.msra.mxu0 %v353
        %490 = vmatprep.mubr.f32.mxu0 %v226
        %491 = vmatmul.mubr.f32.gmra.mrb[0].mxu0 %v225
        %v492 = vpop.f32.mrb[0].mxu0
        %v493 = vadd.f32 0.0, %v492
        %v494 = vpop.f32.mrb[0].mxu0
        %v495 = vadd.f32 0.0, %v494
        %496 = vdwg.mxu0
        %497 = vadd.xlane.f32.xlu0 %v422
        %v498 = vpop.xlane.xlu0 %497
        %v499 = vrot.slane %v498, 4
        %v500 = vadd.f32 %v498, %v499
        %v501 = vrot.slane %v500, 2
        %v502 = vadd.f32 %v500, %v501
        %v503 = vrot.slane %v502, 1
        %v504 = vadd.f32 %v502, %v503
        %s505 = vtos %v504
        %v506 = vmul.f32 %v422, %v422
        %507 = vadd.xlane.f32.xlu0 %v506
        %v508 = vpop.xlane.xlu0 %507
        %v509 = vrot.slane %v508, 4
        %v510 = vadd.f32 %v508, %v509
        %v511 = vrot.slane %v510, 2
        %v512 = vadd.f32 %v510, %v511
        %v513 = vrot.slane %v512, 1
        %v514 = vadd.f32 %v512, %v513
        %s515 = vtos %v514
        %s516 = smul.f32 %s505, 0.0009765625
        %s517 = smul.f32 %s515, 0.0009765625
        %s518 = smul.f32 %s516, %s516
        %s519 = ssub.f32 %s517, %s518
        %v520 = vstv %s516
        %v521 = vsub.f32 %v422, %v520
        %s522 = sadd.f32 %s519, 1e-05
        %v523 = vstv %s522
        %v524 = vrsqrt.pop %v523
        %s525 = vtos %v524
        %v526 = vstv %s525
        %v527 = vmul.f32 %v521, %v526
        %s528 = sld [smem:[#allocation2]]
        %v529 = vstv %s528
        %v530 = vmul.f32 %v527, %v529
        %s531 = sld [smem:[#allocation4]]
        %v532 = vstv %s531
        %v533 = vadd.f32 %v530, %v532
        %v534 = vmax.f32 %v533, 0.0
        %535 = vst [vmem:[%s224] sm:$0xff] %v534
        %536 = vadd.xlane.f32.xlu0 %v424
        %v537 = vpop.xlane.xlu0 %536
        %v538 = vrot.slane %v537, 4
        %v539 = vadd.f32 %v537, %v538
        %v540 = vrot.slane %v539, 2
        %v541 = vadd.f32 %v539, %v540
        %v542 = vrot.slane %v541, 1
        %v543 = vadd.f32 %v541, %v542
        %s544 = vtos %v543
        %v545 = vmul.f32 %v424, %v424
        %546 = vadd.xlane.f32.xlu0 %v545
        %v547 = vpop.xlane.xlu0 %546
        %v548 = vrot.slane %v547, 4
        %v549 = vadd.f32 %v547, %v548
        %v550 = vrot.slane %v549, 2
        %v551 = vadd.f32 %v549, %v550
        %v552 = vrot.slane %v551, 1
        %v553 = vadd.f32 %v551, %v552
        %s554 = vtos %v553
        %s555 = smul.f32 %s544, 0.0009765625
        %s556 = smul.f32 %s554, 0.0009765625
        %s557 = smul.f32 %s555, %s555
        %s558 = ssub.f32 %s556, %s557
        %v559 = vstv %s555
        %v560 = vsub.f32 %v424, %v559
        %s561 = sadd.f32 %s558, 1e-05
        %v562 = vstv %s561
        %v563 = vrsqrt.pop %v562
        %s564 = vtos %v563
        %v565 = vstv %s564
        %v566 = vmul.f32 %v560, %v565
        %s567 = sld [smem:[#allocation2 + $0x1]]
        %v568 = vstv %s567
        %v569 = vmul.f32 %v566, %v568
        %s570 = sld [smem:[#allocation4 + $0x1]]
        %v571 = vstv %s570
        %v572 = vadd.f32 %v569, %v571
        %v573 = vmax.f32 %v572, 0.0
        %s574 = scalar_lea.vmem %s224, 8
        %575 = vst [vmem:[%s574] sm:$0xff] %v573
        %576 = vadd.xlane.f32.xlu0 %v493
        %v577 = vpop.xlane.xlu0 %576
        %v578 = vrot.slane %v577, 4
        %v579 = vadd.f32 %v577, %v578
        %v580 = vrot.slane %v579, 2
        %v581 = vadd.f32 %v579, %v580
        %v582 = vrot.slane %v581, 1
        %v583 = vadd.f32 %v581, %v582
        %s584 = vtos %v583
        %v585 = vmul.f32 %v493, %v493
        %586 = vadd.xlane.f32.xlu0 %v585
        %v587 = vpop.xlane.xlu0 %586
        %v588 = vrot.slane %v587, 4
        %v589 = vadd.f32 %v587, %v588
        %v590 = vrot.slane %v589, 2
        %v591 = vadd.f32 %v589, %v590
        %v592 = vrot.slane %v591, 1
        %v593 = vadd.f32 %v591, %v592
        %s594 = vtos %v593
        %s595 = smul.f32 %s584, 0.0009765625
        %s596 = smul.f32 %s594, 0.0009765625
        %s597 = smul.f32 %s595, %s595
        %s598 = ssub.f32 %s596, %s597
        %v599 = vstv %s595
        %v600 = vsub.f32 %v493, %v599
        %s601 = sadd.f32 %s598, 1e-05
        %v602 = vstv %s601
        %v603 = vrsqrt.pop %v602
        %s604 = vtos %v603
        %v605 = vstv %s604
        %v606 = vmul.f32 %v600, %v605
        %s607 = sld [smem:[#allocation2 + $0x2]]
        %v608 = vstv %s607
        %v609 = vmul.f32 %v606, %v608
        %s610 = sld [smem:[#allocation4 + $0x2]]
        %v611 = vstv %s610
        %v612 = vadd.f32 %v609, %v611
        %v613 = vmax.f32 %v612, 0.0
        %s614 = scalar_lea.vmem %s224, 16
        %615 = vst [vmem:[%s614] sm:$0xff] %v613
        %616 = vadd.xlane.f32.xlu0 %v495
        %v617 = vpop.xlane.xlu0 %616
        %v618 = vrot.slane %v617, 4
        %v619 = vadd.f32 %v617, %v618
        %v620 = vrot.slane %v619, 2
        %v621 = vadd.f32 %v619, %v620
        %v622 = vrot.slane %v621, 1
        %v623 = vadd.f32 %v621, %v622
        %s624 = vtos %v623
        %v625 = vmul.f32 %v495, %v495
        %626 = vadd.xlane.f32.xlu0 %v625
        %v627 = vpop.xlane.xlu0 %626
        %v628 = vrot.slane %v627, 4
        %v629 = vadd.f32 %v627, %v628
        %v630 = vrot.slane %v629, 2
        %v631 = vadd.f32 %v629, %v630
        %v632 = vrot.slane %v631, 1
        %v633 = vadd.f32 %v631, %v632
        %s634 = vtos %v633
        %s635 = smul.f32 %s624, 0.0009765625
        %s636 = smul.f32 %s634, 0.0009765625
        %s637 = smul.f32 %s635, %s635
        %s638 = ssub.f32 %s636, %s637
        %v639 = vstv %s635
        %v640 = vsub.f32 %v495, %v639
        %s641 = sadd.f32 %s638, 1e-05
        %v642 = vstv %s641
        %v643 = vrsqrt.pop %v642
        %s644 = vtos %v643
        %v645 = vstv %s644
        %v646 = vmul.f32 %v640, %v645
        %s647 = sld [smem:[#allocation2 + $0x3]]
        %v648 = vstv %s647
        %v649 = vmul.f32 %v646, %v648
        %s650 = sld [smem:[#allocation4 + $0x3]]
        %v651 = vstv %s650
        %v652 = vadd.f32 %v649, %v651
        %v653 = vmax.f32 %v652, 0.0
        %s654 = scalar_lea.vmem %s224, 24
        %655 = vst [vmem:[%s654] sm:$0xff] %v653
        %p656 = scmp.lt.s32.totalorder %s17, 1
        %s657 = scalar_select %p656, %s17, 1
        %s658 = smul.addr %s657, 4
        %s659 = smul.addr %s658, 8
        %s660 = scalar_lea.vmem %s4, %s659
        // Predicated region
        $region45: #{upsample_forward.1} parent=35 // pred_check
          %p661 = pneg %p124
        $region46: #{upsample_forward.1} parent=35 // pred_check_branch
          %663 = sbr.rel (%p661) target = $region48
        $region47: #{upsample_forward.1} parent=35 // pred_region
          _
        $region48: #{upsample_forward.1} parent=35 // pred_fallthru
          _
      $region36: #{upsample_forward.1} parent=5 // pred_fallthru
        _
      %p664 = scmp.le.s32.totalorder 2, %s12
      // Predicated region
      $region49: #{upsample_forward.1} parent=5 // pred_check
        %p665 = pneg %p664
      $region50: #{upsample_forward.1} parent=5 // pred_check_branch
        %667 = sbr.rel (%p665) target = $region52
      $region51: #{upsample_forward.1} parent=5 // pred_region
        %s668 = ssub.s32 %s12, 2
        // Predicated region
        $region53: #{upsample_forward.1} parent=51 // pred_check
          %p669 = pneg %p130
        $region54: #{upsample_forward.1} parent=51 // pred_check_branch
          %671 = sbr.rel (%p669) target = $region56
        $region55: #{upsample_forward.1} parent=51 // pred_region
          %p672 = scmp.lt.s32.totalorder %s18, 1
          %s673 = scalar_select %p672, %s18, 1
          %s674 = smul.addr %s673, 4
          %s675 = smul.addr %s674, 8
          %s676 = scalar_lea.vmem %s4, %s675
        $region56: #{upsample_forward.1} parent=51 // pred_fallthru
          _
      $region52: #{upsample_forward.1} parent=5 // pred_fallthru
        _
    $region6: #{upsample_forward.1} parent=1 // loop_footer
      %s16 = sadd.s32 1, %s12
    $region7: #{upsample_forward.1} parent=1 // loop_footer_branch
      %11 = sbr.rel target = $region3
    $region8: #{upsample_forward.1} parent=1 // loop_exit
      _
    %677 = vsyncpa [#allocation3], 1
    %s678 = scalar_lea.sflag [#allocation3], 1
    %679 = vsyncpa %s678, 1
    %680 = vsyncpa [#allocation5], 1

</llo_original>
